<compile_context>
chip_gen: v7x
topology: tpu7x:2x2x1
jax: 0.10.0
libtpu: 0.0.40
codegen_flags: <defaults>
</compile_context>

<pallas_src>
import functools

import numpy as np
import jax
import jax.numpy as jnp
from jax import lax
from jax.experimental import pallas as pl
from jax.experimental.pallas import tpu as pltpu

EPS = 1e-5  # nn.BatchNorm2d default eps


# ---------------------------------------------------------------------------
# pltpu.roll direction probe (pins the rotate convention so the static tap
# shifts are correct on any backend / jax version; runs once, eagerly).
# ---------------------------------------------------------------------------
_ROLL_SIGN_CACHE = []


def _probe_roll_sign():
    def probe_kernel(x_ref, o_ref):
        o_ref[...] = pltpu.roll(x_ref[...], 1, axis=0)

    x = jnp.broadcast_to(jnp.arange(8, dtype=jnp.int32)[:, None], (8, 128))
    r = pl.pallas_call(
        probe_kernel,
        out_shape=jax.ShapeDtypeStruct((8, 128), jnp.int32),
    )(x)
    first = int(jax.device_get(r)[0, 0])
    if first == 7:      # matches jnp.roll: out[i] = in[(i - shift) % n]
        return 1
    if first == 1:      # opposite rotate direction
        return -1
    return 0            # unknown -> in-kernel jnp.roll fallback


def _roll_sign():
    if not _ROLL_SIGN_CACHE:
        _ROLL_SIGN_CACHE.append(_probe_roll_sign())
    return _ROLL_SIGN_CACHE[0]


def _shift_rows(xf, s, n_rows, sign):
    """out[r] = xf[(r - s) mod n_rows]  (jnp.roll semantics along axis 0)."""
    if s % n_rows == 0:
        return xf
    if sign == 0:                       # safe (slower) fallback
        return jnp.roll(xf, s, axis=0)
    return pltpu.roll(xf, (sign * s) % n_rows, axis=0)


# ---------------------------------------------------------------------------
# Fused Conv2d(3x3, stride 1, pad 1) + BatchNorm2d(train stats) + Sigmoid
# ---------------------------------------------------------------------------
def _conv3x3_bn_sigmoid_kernel(roll_sign, x_ref, w_ref, g_ref, b_ref, o_ref):
    # x_ref: (N, H, W, Cin)  f32   resident (same block every grid step)
    # w_ref: (3, 3, Cin, Cb) bf16  streamed per output-channel block
    # g_ref, b_ref: (1, Cb)  f32   BatchNorm gamma / beta
    # o_ref: (N, H, W, Cb)   f32
    N, H, W, Cin = x_ref.shape
    Cb = w_ref.shape[-1]
    R = N * H * W

    xf = x_ref[...].reshape(R, Cin)

    # Spatial coordinates of every flattened output row (static shapes).
    ridx = lax.broadcasted_iota(jnp.int32, (R, 1), 0)
    wcol = ridx % W
    hrow = (ridx // W) % H
    h_mask = (hrow >= 1, None, hrow <= H - 2)   # per-ky validity (pad=1)
    w_mask = (wcol >= 1, None, wcol <= W - 2)   # per-kx validity (pad=1)

    # 3x3 conv as 9 shifted MXU matmuls. Each (ky, kx) shift is a cyclic roll
    # of the flattened activation plus a boundary mask -- no padded buffer and
    # no sublane-axis slicing.
    # NOTE: the conv bias is intentionally omitted; it cancels exactly against
    # the training-mode BatchNorm mean subtraction that follows.
    acc = jnp.zeros((R, Cb), jnp.float32)
    for ky in range(3):
        for kx in range(3):
            s = (1 - ky) * W + (1 - kx)
            p = _shift_rows(xf, s, R, roll_sign)
            m = None
            for mm in (h_mask[ky], w_mask[kx]):
                if mm is not None:
                    m = mm if m is None else jnp.logical_and(m, mm)
            if m is not None:
                p = jnp.where(m, p, 0.0)
            acc = acc + jnp.dot(p, w_ref[ky, kx].astype(jnp.float32),
                                preferred_element_type=jnp.float32)

    # BatchNorm2d, training-mode batch stats (biased variance), one-pass moments.
    inv_r = 1.0 / R
    mean = jnp.sum(acc, axis=0, keepdims=True) * inv_r
    var = jnp.maximum(
        jnp.sum(acc * acc, axis=0, keepdims=True) * inv_r - mean * mean, 0.0)
    y = (acc - mean) * (g_ref[...] * lax.rsqrt(var + EPS)) + b_ref[...]
    y = jax.nn.sigmoid(y)
    o_ref[...] = y.reshape(N, H, W, Cb)


def conv3x3_bn_sigmoid(x, w, gamma, beta, *, block_c=128,
                       vmem_limit_bytes=16 * 1024 * 1024):
    """x: (N,H,W,Cin) f32; w: (3,3,Cin,Cout) bf16 HWIO; gamma/beta: (1,Cout) f32."""
    N, H, W, Cin = x.shape
    assert w.shape[:3] == (3, 3, Cin), w.shape
    Cout = w.shape[-1]
    block_c = min(block_c, Cout)
    assert Cout % block_c == 0, (Cout, block_c)

    roll_sign = _roll_sign()   # eager probe (cached) -- outside any trace

    kernel = functools.partial(_conv3x3_bn_sigmoid_kernel, roll_sign)
    return pl.pallas_call(
        kernel,
        out_shape=jax.ShapeDtypeStruct((N, H, W, Cout), jnp.float32),
        grid=(Cout // block_c,),
        in_specs=[
            # full activation, resident across the (parallel) channel grid
            pl.BlockSpec((N, H, W, Cin), lambda j: (0, 0, 0, 0)),
            # bf16 weights streamed one output-channel block per grid step
            pl.BlockSpec((3, 3, Cin, block_c), lambda j: (0, 0, 0, j)),
            pl.BlockSpec((1, block_c), lambda j: (0, j)),
            pl.BlockSpec((1, block_c), lambda j: (0, j)),
        ],
        out_specs=pl.BlockSpec((N, H, W, block_c), lambda j: (0, 0, 0, j)),
        compiler_params=pltpu.CompilerParams(
            dimension_semantics=("parallel",),
            vmem_limit_bytes=vmem_limit_bytes,
        ),
    )(x, w, gamma, beta)


def midlevel_forward(x, w1, g1, be1, w2, g2, be2):
    """MidLevel: conv3x3(512->512)+BN+sigmoid -> conv3x3(512->256)+BN+sigmoid."""
    y = conv3x3_bn_sigmoid(x, w1, g1, be1)
    y = conv3x3_bn_sigmoid(y, w2, g2, be2)
    return y
# TODO(synk): the remaining AutoColoringModel stages (LowLevel / GlobalLevel /
# fusion / Colorization: strided convs, FC layers, transposed convs) are not
# kernelized here; they would reuse this same fused conv+BN+sigmoid block.


# ---------------------------------------------------------------------------
# Plain-JAX reference (same NHWC/HWIO convention, faithful module math:
# conv *with* bias, two-pass BN, f32 everywhere; weights upcast from bf16).
# ---------------------------------------------------------------------------
def reference_forward(x, w1, b1, g1, be1, w2, b2, g2, be2):
    def conv(x, w, b):
        y = lax.conv_general_dilated(
            x, w.astype(jnp.float32), window_strides=(1, 1), padding="SAME",
            dimension_numbers=("NHWC", "HWIO", "NHWC"))
        return y + b.reshape(1, 1, 1, -1)

    def bn(y, g, be):
        m = jnp.mean(y, axis=(0, 1, 2), keepdims=True)
        v = jnp.mean((y - m) ** 2, axis=(0, 1, 2), keepdims=True)
        return (y - m) * g.reshape(1, 1, 1, -1) * lax.rsqrt(v + EPS) \
            + be.reshape(1, 1, 1, -1)

    y = jax.nn.sigmoid(bn(conv(x, w1, b1), g1, be1))
    y = jax.nn.sigmoid(bn(conv(y, w2, b2), g2, be2))
    return y


if __name__ == "__main__":
    # Channel dims fixed by the module (512 -> 512 -> 256); small batch/spatial.
    N, H, W = 2, 8, 8
    Cin, C1, C2 = 512, 512, 256

    key = jax.random.PRNGKey(0)
    ks = jax.random.split(key, 9)

    # Parameters; conv weights are stored in bf16 (one-time cast, not per call).
    w1 = (jax.random.normal(ks[0], (3, 3, Cin, C1), jnp.float32) * 0.02
          ).astype(jnp.bfloat16)
    b1 = jax.random.normal(ks[1], (1, C1), jnp.float32) * 0.01
    g1 = 1.0 + 0.1 * jax.random.normal(ks[2], (1, C1), jnp.float32)
    be1 = 0.1 * jax.random.normal(ks[3], (1, C1), jnp.float32)

    w2 = (jax.random.normal(ks[4], (3, 3, C1, C2), jnp.float32) * 0.02
          ).astype(jnp.bfloat16)
    b2 = jax.random.normal(ks[5], (1, C2), jnp.float32) * 0.01
    g2 = 1.0 + 0.1 * jax.random.normal(ks[6], (1, C2), jnp.float32)
    be2 = 0.1 * jax.random.normal(ks[7], (1, C2), jnp.float32)

    x = jax.random.normal(ks[8], (N, H, W, Cin), jnp.float32)

    # Kernel path (conv biases omitted: cancelled exactly by BN mean subtraction).
    out = jax.block_until_ready(midlevel_forward(x, w1, g1, be1, w2, g2, be2))

    # Reference path (includes the biases, same bf16-quantized weights).
    ref = jax.block_until_ready(
        reference_forward(x, w1, b1, g1, be1, w2, b2, g2, be2))

    assert out.shape == (N, H, W, C2), out.shape
    np.testing.assert_allclose(np.asarray(out), np.asarray(ref),
                               rtol=1e-3, atol=2e-3)
    print("KERNEL_OK")
</pallas_src>

<mosaic_0001>
module attributes {stable_mosaic.version = 11 : i64} {
  func.func @probe_kernel(%arg0: memref<8x128xi32, #tpu.memory_space<vmem>>, %arg1: memref<8x128xi32, #tpu.memory_space<vmem>>) attributes {dimension_semantics = [], scalar_prefetch = 0 : i64, scratch_operands = 0 : i64, tpu.core_type = #tpu.core_type<tc>} {
    %c0 = arith.constant 0 : index
    %c0_0 = arith.constant 0 : index
    %0 = vector.load %arg0[%c0, %c0_0] : memref<8x128xi32, #tpu.memory_space<vmem>>, vector<8x128xi32>
    %c1_i32 = arith.constant 1 : i32
    %1 = tpu.dynamic_rotate %0 by %c1_i32 dim 0 : vector<8x128xi32>, i32 -> vector<8x128xi32>
    %c0_1 = arith.constant 0 : index
    %c0_2 = arith.constant 0 : index
    %2 = vector.load %arg1[%c0_1, %c0_2] : memref<8x128xi32, #tpu.memory_space<vmem>>, vector<8x128xi32>
    tpu.vector_store %arg1[%c0_1, %c0_2], %1 {strides = array<i32>} : memref<8x128xi32, #tpu.memory_space<vmem>>, vector<8x128xi32>,
    return
  }
}

</mosaic_0001>

<llo_original>
// kernel: tpu_custom_call.1
$region0: #{tpu_custom_call.1}
  #allocation0 [shape = 'u32[]', space=smem, size = 0x4, offset = 0x4, fixed_abs, tag = 'smem constant byte address 0x4 - core index']
  #allocation1 [shape = 'u32[144,128]{1,0:T(1,128)}', space=vmem, size = 0x12000, scoped, tag = 'internal scratch']
  %s0 = inlined_call_operand.hbm [shape: s32[8,128], index: 0, kind: input, shape index: {}]
  %s1 = inlined_call_operand.hbm [shape: s32[8,128], index: 1, kind: output, shape index: {}]
  %s2 = sld [smem:[#allocation0]]
  $region18: #{tpu_custom_call.1} parent=0
    _
  %s4 = ssub.s32 1, %s2
  %s5 = scalar_select 0, %s4, %s2
  $region1: #{tpu_custom_call.1} parent=0
    #allocation2 [shape = 'u8[4096]{0}', space=vmem, size = 0x1000, scoped, tag = 'input window, operand 0, single buffered']
    #allocation3 [shape = 's32[1]{0}', space=sflag, size = 0x4, scoped, tag = 'scoped memory for tpu_custom_call.1']
    #allocation4 [shape = 's32[1]{0}', space=sflag, size = 0x4, scoped, tag = 'scoped memory for tpu_custom_call.1']
    #allocation5 [shape = 'u8[4096]{0}', space=vmem, size = 0x1000, scoped, tag = 'output window, operand 0, single buffered']
    %6 = vsyncpa [#allocation3], 0
    %7 = vsyncpa [#allocation4], 0
    // Predicated region
    $region2: #{tpu_custom_call.1} parent=1 // pred_check
      _
    $region3: #{tpu_custom_call.1} parent=1 // pred_check_branch
      %9 = sbr.rel (0) target = $region5
    $region4: #{tpu_custom_call.1} parent=1 // pred_region
      %s11 = ssub.s32 128, 128
      %12 = vsyncadd [#allocation3], %s11
      %s14 = sshll.u32 [#allocation2], 4
      %s15 = int_to_ptr.vmem [resolvable:$true] %s14
      %17 = dma.hbm_to_vmem [thread:$0]  %s0, 128, %s15, [#allocation3]
    $region5: #{tpu_custom_call.1} parent=1 // pred_fallthru
      _
    // Predicated region
    $region6: #{tpu_custom_call.1} parent=1 // pred_check
      _
    $region7: #{tpu_custom_call.1} parent=1 // pred_check_branch
      %19 = sbr.rel (0) target = $region9
    $region8: #{tpu_custom_call.1} parent=1 // pred_region
      %20 = dma.done [#allocation3], 128
    $region9: #{tpu_custom_call.1} parent=1 // pred_fallthru
      _
    %v21 = vld [vmem:[#allocation2] sm:$0xff]
    %v22 = vrot.slane %v21, 7
    %23 = vst [vmem:[#allocation5] sm:$0xff] %v22
    // Predicated region
    $region10: #{tpu_custom_call.1} parent=1 // pred_check
      _
    $region11: #{tpu_custom_call.1} parent=1 // pred_check_branch
      %25 = sbr.rel (0) target = $region13
    $region12: #{tpu_custom_call.1} parent=1 // pred_region
      %s27 = ssub.s32 128, 128
      %28 = vsyncadd [#allocation4], %s27
      %s30 = sshll.u32 [#allocation5], 4
      %s31 = int_to_ptr.vmem [resolvable:$true] %s30
      %33 = dma.vmem_to_hbm [thread:$0]  %s31, 128, %s1, [#allocation4]
    $region13: #{tpu_custom_call.1} parent=1 // pred_fallthru
      _
    // Predicated region
    $region14: #{tpu_custom_call.1} parent=1 // pred_check
      _
    $region15: #{tpu_custom_call.1} parent=1 // pred_check_branch
      %35 = sbr.rel (0) target = $region17
    $region16: #{tpu_custom_call.1} parent=1 // pred_region
      %36 = dma.done [#allocation4], 128
    $region17: #{tpu_custom_call.1} parent=1 // pred_fallthru
      _
    %37 = vsyncpa [#allocation3], 1
    %38 = vsyncpa [#allocation4], 1

</llo_original>
